<compile_context>
chip_gen: v7x
topology: tpu7x:2x2x1
jax: 0.10.0
libtpu: 0.0.40
codegen_flags: <defaults>
</compile_context>

<pallas_src>
import functools

import jax
import jax.numpy as jnp
from jax import lax
from jax.experimental import pallas as pl
from jax.experimental.pallas import tpu as pltpu

KH = KW = 3
PAD = 1        # stride=1, dilation=1 (module defaults) -- only this config.


def _round_up(x, m):
    return (x + m - 1) // m * m


def cbr_kernel(x_ref, w_ref, scale_ref, shift_ref, o_ref, xb_ref, *, H, W,
               margin):
    """One grid step = (one image n, one Cout tile).

    x_ref:     (Cin, H*W)          flattened NCHW image (one n)
    w_ref:     (KH, KW, Ct, Cin)   conv weights, tap-major
    scale_ref: (Ct, 1)  f32        gamma / sqrt(var + eps)
    shift_ref: (Ct, 1)  f32        (conv_bias - mean) * scale + beta
    o_ref:     (Ct, H*W)           output tile (NCHW with spatial flattened)
    xb_ref:    (Cin, 2*margin+H*W) VMEM scratch with zeroed margins
    """
    HW = H * W
    Cin = x_ref.shape[0]
    Ct = o_ref.shape[0]
    dt = x_ref.dtype

    # Stage the image (plus zero margins) into VMEM once per image; later Cout
    # tiles of the same image reuse it (the Cout grid axis is "arbitrary").
    @pl.when(pl.program_id(1) == 0)
    def _():
        xb_ref[:, 0:margin] = jnp.zeros((Cin, margin), dt)
        xb_ref[:, margin + HW:margin + HW + margin] = jnp.zeros((Cin, margin), dt)
        xb_ref[:, margin:margin + HW] = x_ref[...]

    # Column masks: a tap with dw=-1 must not contribute at w==0, a tap with
    # dw=+1 must not contribute at w==W-1 (those flat shifts would wrap into
    # the neighbouring image row). Row over/underflow lands in the zero margins.
    col = lax.broadcasted_iota(jnp.int32, (1, HW), 1) % W
    not_first = (col != 0).astype(dt)
    not_last = (col != (W - 1)).astype(dt)

    acc = jnp.zeros((Ct, HW), jnp.float32)
    for kh in range(KH):
        for kw in range(KW):
            start = margin + (kh - 1) * W + (kw - 1)
            patch = xb_ref[:, start:start + HW]            # (Cin, HW)
            if kw == 0:
                patch = patch * not_first
            elif kw == 2:
                patch = patch * not_last
            # (Ct, Cin) @ (Cin, HW) -> lane-dense (Ct, HW) on the MXU.
            acc += jnp.dot(w_ref[kh, kw], patch,
                           preferred_element_type=jnp.float32)

    y = acc * scale_ref[...] + shift_ref[...]              # conv-bias + BN (f32)
    y = jnp.maximum(y, 0.0)                                # ReLU
    o_ref[...] = y.astype(o_ref.dtype)


def cbr_forward(x_nchw, w_oihw, conv_bias, gamma, beta, run_mean, run_var,
                eps=1e-5, mxu_dtype=None):
    """PyTorch-semantics CBR forward (eval-mode BatchNorm) via Pallas."""
    N, Cin, H, W = x_nchw.shape
    Cout = w_oihw.shape[0]
    out_dtype = x_nchw.dtype
    HW = H * W

    # ---- glue (plain JAX, no HBM-sized copies) -----------------------------
    x_flat = x_nchw.reshape(N, Cin, HW)                    # free (contiguous)
    w_tap = jnp.transpose(w_oihw, (2, 3, 0, 1))            # (KH,KW,Cout,Cin), tiny
    if mxu_dtype is not None:                              # bf16 feed (v6e/v7x)
        x_flat = x_flat.astype(mxu_dtype)
        w_tap = w_tap.astype(mxu_dtype)
    compute_dt = x_flat.dtype

    scale = (gamma / jnp.sqrt(run_var + eps)).astype(jnp.float32)   # (Cout,)
    shift = ((conv_bias - run_mean) * scale + beta).astype(jnp.float32)
    scale2 = scale.reshape(Cout, 1)
    shift2 = shift.reshape(Cout, 1)

    # Cout tiling: <=128 output channels per step (lane-dense weights tile,
    # bounded per-step VMEM). Assumes divisibility for larger layers.
    ct = Cout if Cout <= 128 else 128
    assert Cout % ct == 0, "Cout > 128 must be a multiple of 128"

    # Zero margin on each side of the flattened image: >= W+1 elements so that
    # every tap shift stays in-bounds; rounded to 128 so the interior copy is
    # lane-aligned.
    margin = _round_up(W + 1, 128)

    kernel = functools.partial(cbr_kernel, H=H, W=W, margin=margin)

    out_flat = pl.pallas_call(
        kernel,
        out_shape=jax.ShapeDtypeStruct((N, Cout, HW), out_dtype),
        grid_spec=pltpu.PrefetchScalarGridSpec(
            num_scalar_prefetch=0,
            grid=(N, Cout // ct),
            in_specs=[
                pl.BlockSpec((None, Cin, HW), lambda n, c: (n, 0, 0)),
                pl.BlockSpec((KH, KW, ct, Cin), lambda n, c: (0, 0, c, 0)),
                pl.BlockSpec((ct, 1), lambda n, c: (c, 0)),
                pl.BlockSpec((ct, 1), lambda n, c: (c, 0)),
            ],
            out_specs=pl.BlockSpec((None, ct, HW), lambda n, c: (n, c, 0)),
            scratch_shapes=[pltpu.VMEM((Cin, HW + 2 * margin), compute_dt)],
        ),
        compiler_params=pltpu.CompilerParams(
            # Images are independent (megacore); the Cout axis reuses the
            # staged scratch image, so keep it sequential on a core.
            dimension_semantics=("parallel", "arbitrary"),
            vmem_limit_bytes=32 * 1024 * 1024,
        ),
    )(x_flat, w_tap, scale2, shift2)

    # TODO(synk): for large images where (Cin + Cout_tile)*H*W*4B no longer
    # fits the VMEM budget (esp. v7x's 64 MiB), add an H-row grid axis with a
    # manual halo DMA; not needed at these layer sizes.
    return out_flat.reshape(N, Cout, H, W)                 # free (contiguous)


def _reference(x_nchw, w_oihw, conv_bias, gamma, beta, run_mean, run_var,
               eps=1e-5):
    y = lax.conv_general_dilated(
        x_nchw, w_oihw, window_strides=(1, 1),
        padding=((PAD, PAD), (PAD, PAD)),
        dimension_numbers=("NCHW", "OIHW", "NCHW"))
    y = y + conv_bias[None, :, None, None]
    y = (y - run_mean[None, :, None, None]) / jnp.sqrt(
        run_var[None, :, None, None] + eps)
    y = y * gamma[None, :, None, None] + beta[None, :, None, None]
    return jnp.maximum(y, 0.0)


if __name__ == "__main__":
    key = jax.random.PRNGKey(0)
    k_x, k_w, k_b, k_g, k_be, k_m, k_v = jax.random.split(key, 7)

    N, Cin, Cout, H, W = 2, 4, 8, 16, 16

    x = jax.random.normal(k_x, (N, Cin, H, W), jnp.float32)

    # Deterministic parameter init (shapes per nn.Conv2d / BatchNorm2d).
    fan_in = Cin * KH * KW
    bound = 1.0 / (fan_in ** 0.5)
    w = jax.random.uniform(k_w, (Cout, Cin, KH, KW), jnp.float32,
                           minval=-bound, maxval=bound)
    b = jax.random.uniform(k_b, (Cout,), jnp.float32,
                           minval=-bound, maxval=bound)
    gamma = 1.0 + 0.1 * jax.random.normal(k_g, (Cout,), jnp.float32)
    beta = 0.1 * jax.random.normal(k_be, (Cout,), jnp.float32)
    run_mean = 0.1 * jax.random.normal(k_m, (Cout,), jnp.float32)
    run_var = jax.random.uniform(k_v, (Cout,), jnp.float32,
                                 minval=0.5, maxval=1.5)

    # TODO(synk): training-mode BatchNorm (batch statistics) not implemented;
    # eval-mode (running-stats) BN is used, matching module.eval() semantics.
    ref = _reference(x, w, b, gamma, beta, run_mean, run_var)

    # f32 path (exact-tolerance check vs. the XLA reference).
    out = cbr_forward(x, w, b, gamma, beta, run_mean, run_var)
    out = jax.block_until_ready(out)
    assert out.shape == (N, Cout, H, W)
    assert jnp.allclose(out, ref, atol=1e-4, rtol=1e-4), "f32 mismatch vs ref"

    # bf16 MXU-feed path (perf path for v6e/v7x); loose tolerance vs f32 ref.
    out_bf16 = cbr_forward(x, w, b, gamma, beta, run_mean, run_var,
                           mxu_dtype=jnp.bfloat16)
    out_bf16 = jax.block_until_ready(out_bf16)
    assert jnp.allclose(out_bf16, ref, atol=1e-1, rtol=1e-1), "bf16 mismatch"

    print("KERNEL_OK")
</pallas_src>

<mosaic_0001>
module attributes {stable_mosaic.version = 11 : i64} {
  func.func @cbr_kernel(%arg0: i32, %arg1: i32, %arg2: memref<1x4x256xf32, #tpu.memory_space<vmem>>, %arg3: memref<3x3x8x4xf32, #tpu.memory_space<vmem>>, %arg4: memref<8x1xf32, #tpu.memory_space<vmem>>, %arg5: memref<8x1xf32, #tpu.memory_space<vmem>>, %arg6: memref<1x8x256xf32, #tpu.memory_space<vmem>>, %arg7: memref<4x512xf32, #tpu.memory_space<vmem>>) attributes {dimension_semantics = [#tpu.dimension_semantics<parallel>, #tpu.dimension_semantics<arbitrary>], iteration_bounds = array<i64: 2, 1>, scalar_prefetch = 0 : i64, scratch_operands = 1 : i64, tpu.core_type = #tpu.core_type<tc>, window_params = [{transform_indices = @transform_0, window_bounds = array<i64: 1, 4, 256>}, {transform_indices = @transform_1, window_bounds = array<i64: 3, 3, 8, 4>}, {transform_indices = @transform_2, window_bounds = array<i64: 8, 1>}, {transform_indices = @transform_3, window_bounds = array<i64: 8, 1>}, {transform_indices = @transform_4, window_bounds = array<i64: 1, 8, 256>}]} {
    %c0_i32 = arith.constant 0 : i32
    %0 = arith.cmpi eq, %arg1, %c0_i32 : i32
    %1 = arith.extui %0 : i1 to i32
    %c0_i32_0 = arith.constant 0 : i32
    %2 = arith.cmpi ne, %1, %c0_i32_0 : i32
    scf.if %2 {
      %cst_65 = arith.constant 0.000000e+00 : f32
      %97 = vector.broadcast %cst_65 : f32 to vector<4x128xf32>
      %c0_66 = arith.constant 0 : index
      %c0_67 = arith.constant 0 : index
      %98 = vector.load %arg7[%c0_66, %c0_67] : memref<4x512xf32, #tpu.memory_space<vmem>>, vector<4x128xf32>
      tpu.vector_store %arg7[%c0_66, %c0_67], %97 {strides = array<i32>} : memref<4x512xf32, #tpu.memory_space<vmem>>, vector<4x128xf32>,
      %cst_68 = arith.constant 0.000000e+00 : f32
      %99 = vector.broadcast %cst_68 : f32 to vector<4x128xf32>
      %c0_69 = arith.constant 0 : index
      %c384 = arith.constant 384 : index
      %100 = vector.load %arg7[%c0_69, %c384] : memref<4x512xf32, #tpu.memory_space<vmem>>, vector<4x128xf32>
      tpu.vector_store %arg7[%c0_69, %c384], %99 {strides = array<i32>} : memref<4x512xf32, #tpu.memory_space<vmem>>, vector<4x128xf32>,
      %c0_70 = arith.constant 0 : index
      %c0_71 = arith.constant 0 : index
      %c0_72 = arith.constant 0 : index
      %101 = vector.load %arg2[%c0_70, %c0_71, %c0_72] : memref<1x4x256xf32, #tpu.memory_space<vmem>>, vector<1x4x256xf32>
      %102 = vector.shape_cast %101 : vector<1x4x256xf32> to vector<4x256xf32>
      %c0_73 = arith.constant 0 : index
      %c128_74 = arith.constant 128 : index
      %103 = vector.load %arg7[%c0_73, %c128_74] : memref<4x512xf32, #tpu.memory_space<vmem>>, vector<4x256xf32>
      tpu.vector_store %arg7[%c0_73, %c128_74], %102 {strides = array<i32>} : memref<4x512xf32, #tpu.memory_space<vmem>>, vector<4x256xf32>,
    } else {
    }
    %3 = tpu.iota {dimensions = array<i32: 1>} : vector<1x256xi32>
    %c16_i32 = arith.constant 16 : i32
    %c0_i32_1 = arith.constant 0 : i32
    %4 = arith.cmpi eq, %c16_i32, %c0_i32_1 : i32
    %c1_i32 = arith.constant 1 : i32
    %5 = arith.select %4, %c1_i32, %c16_i32 : i32
    %6 = vector.broadcast %5 : i32 to vector<1x256xi32>
    %7 = arith.remsi %3, %6 : vector<1x256xi32>
    %c0_i32_2 = arith.constant 0 : i32
    %8 = vector.broadcast %c0_i32_2 : i32 to vector<1x256xi32>
    %9 = arith.cmpi ne, %7, %8 : vector<1x256xi32>
    %c0_i32_3 = arith.constant 0 : i32
    %10 = vector.broadcast %c0_i32_3 : i32 to vector<1x256xi32>
    %11 = arith.cmpi slt, %7, %10 : vector<1x256xi32>
    %c0_i32_4 = arith.constant 0 : i32
    %12 = arith.cmpi slt, %5, %c0_i32_4 : i32
    %13 = vector.broadcast %12 : i1 to vector<1x256xi1>
    %14 = vector.broadcast %13 : vector<1x256xi1> to vector<1x256xi1>
    %15 = arith.xori %11, %14 : vector<1x256xi1>
    %16 = arith.andi %15, %9 : vector<1x256xi1>
    %17 = vector.broadcast %5 : i32 to vector<1x256xi32>
    %18 = arith.addi %7, %17 : vector<1x256xi32>
    %19 = arith.select %16, %18, %7 : vector<1x256xi1>, vector<1x256xi32>
    %c0_i32_5 = arith.constant 0 : i32
    %20 = vector.broadcast %c0_i32_5 : i32 to vector<1x256xi32>
    %21 = arith.cmpi ne, %19, %20 : vector<1x256xi32>
    %22 = arith.extui %21 : vector<1x256xi1> to vector<1x256xi32>
    %23 = arith.sitofp %22 : vector<1x256xi32> to vector<1x256xf32>
    %c15_i32 = arith.constant 15 : i32
    %24 = vector.broadcast %c15_i32 : i32 to vector<1x256xi32>
    %25 = arith.cmpi ne, %19, %24 : vector<1x256xi32>
    %26 = arith.extui %25 : vector<1x256xi1> to vector<1x256xi32>
    %27 = arith.sitofp %26 : vector<1x256xi32> to vector<1x256xf32>
    %cst = arith.constant 0.000000e+00 : f32
    %28 = vector.broadcast %cst : f32 to vector<8x256xf32>
    %c0 = arith.constant 0 : index
    %c111 = arith.constant 111 : index
    %29 = vector.load %arg7[%c0, %c111] : memref<4x512xf32, #tpu.memory_space<vmem>>, vector<4x256xf32>
    %30 = vector.broadcast %23 : vector<1x256xf32> to vector<4x256xf32>
    %31 = arith.mulf %29, %30 : vector<4x256xf32>
    %c0_6 = arith.constant 0 : index
    %c0_7 = arith.constant 0 : index
    %c0_8 = arith.constant 0 : index
    %c0_9 = arith.constant 0 : index
    %32 = vector.load %arg3[%c0_6, %c0_7, %c0_8, %c0_9] : memref<3x3x8x4xf32, #tpu.memory_space<vmem>>, vector<1x1x8x4xf32>
    %33 = vector.shape_cast %32 : vector<1x1x8x4xf32> to vector<8x4xf32>
    %cst_10 = arith.constant dense<0.000000e+00> : vector<8x256xf32>
    %34 = tpu.matmul %33, %31, %cst_10 {dimension_numbers = #tpu.dot_dimension_numbers<[1], [0], [0], [1], [0, 0, 1, 1], [], []>} : vector<8x4xf32>, vector<4x256xf32>, vector<8x256xf32> -> vector<8x256xf32>
    %35 = arith.addf %28, %34 : vector<8x256xf32>
    %c0_11 = arith.constant 0 : index
    %c112 = arith.constant 112 : index
    %36 = vector.load %arg7[%c0_11, %c112] : memref<4x512xf32, #tpu.memory_space<vmem>>, vector<4x256xf32>
    %c0_12 = arith.constant 0 : index
    %c1 = arith.constant 1 : index
    %c0_13 = arith.constant 0 : index
    %c0_14 = arith.constant 0 : index
    %37 = vector.load %arg3[%c0_12, %c1, %c0_13, %c0_14] : memref<3x3x8x4xf32, #tpu.memory_space<vmem>>, vector<1x1x8x4xf32>
    %38 = vector.shape_cast %37 : vector<1x1x8x4xf32> to vector<8x4xf32>
    %cst_15 = arith.constant dense<0.000000e+00> : vector<8x256xf32>
    %39 = tpu.matmul %38, %36, %cst_15 {dimension_numbers = #tpu.dot_dimension_numbers<[1], [0], [0], [1], [0, 0, 1, 1], [], []>} : vector<8x4xf32>, vector<4x256xf32>, vector<8x256xf32> -> vector<8x256xf32>
    %40 = arith.addf %35, %39 : vector<8x256xf32>
    %c0_16 = arith.constant 0 : index
    %c113 = arith.constant 113 : index
    %41 = vector.load %arg7[%c0_16, %c113] : memref<4x512xf32, #tpu.memory_space<vmem>>, vector<4x256xf32>
    %42 = vector.broadcast %27 : vector<1x256xf32> to vector<4x256xf32>
    %43 = arith.mulf %41, %42 : vector<4x256xf32>
    %c0_17 = arith.constant 0 : index
    %c2 = arith.constant 2 : index
    %c0_18 = arith.constant 0 : index
    %c0_19 = arith.constant 0 : index
    %44 = vector.load %arg3[%c0_17, %c2, %c0_18, %c0_19] : memref<3x3x8x4xf32, #tpu.memory_space<vmem>>, vector<1x1x8x4xf32>
    %45 = vector.shape_cast %44 : vector<1x1x8x4xf32> to vector<8x4xf32>
    %cst_20 = arith.constant dense<0.000000e+00> : vector<8x256xf32>
    %46 = tpu.matmul %45, %43, %cst_20 {dimension_numbers = #tpu.dot_dimension_numbers<[1], [0], [0], [1], [0, 0, 1, 1], [], []>} : vector<8x4xf32>, vector<4x256xf32>, vector<8x256xf32> -> vector<8x256xf32>
    %47 = arith.addf %40, %46 : vector<8x256xf32>
    %c0_21 = arith.constant 0 : index
    %c127 = arith.constant 127 : index
    %48 = vector.load %arg7[%c0_21, %c127] : memref<4x512xf32, #tpu.memory_space<vmem>>, vector<4x256xf32>
    %49 = vector.broadcast %23 : vector<1x256xf32> to vector<4x256xf32>
    %50 = arith.mulf %48, %49 : vector<4x256xf32>
    %c1_22 = arith.constant 1 : index
    %c0_23 = arith.constant 0 : index
    %c0_24 = arith.constant 0 : index
    %c0_25 = arith.constant 0 : index
    %51 = vector.load %arg3[%c1_22, %c0_23, %c0_24, %c0_25] : memref<3x3x8x4xf32, #tpu.memory_space<vmem>>, vector<1x1x8x4xf32>
    %52 = vector.shape_cast %51 : vector<1x1x8x4xf32> to vector<8x4xf32>
    %cst_26 = arith.constant dense<0.000000e+00> : vector<8x256xf32>
    %53 = tpu.matmul %52, %50, %cst_26 {dimension_numbers = #tpu.dot_dimension_numbers<[1], [0], [0], [1], [0, 0, 1, 1], [], []>} : vector<8x4xf32>, vector<4x256xf32>, vector<8x256xf32> -> vector<8x256xf32>
    %54 = arith.addf %47, %53 : vector<8x256xf32>
    %c0_27 = arith.constant 0 : index
    %c128 = arith.constant 128 : index
    %55 = vector.load %arg7[%c0_27, %c128] : memref<4x512xf32, #tpu.memory_space<vmem>>, vector<4x256xf32>
    %c1_28 = arith.constant 1 : index
    %c1_29 = arith.constant 1 : index
    %c0_30 = arith.constant 0 : index
    %c0_31 = arith.constant 0 : index
    %56 = vector.load %arg3[%c1_28, %c1_29, %c0_30, %c0_31] : memref<3x3x8x4xf32, #tpu.memory_space<vmem>>, vector<1x1x8x4xf32>
    %57 = vector.shape_cast %56 : vector<1x1x8x4xf32> to vector<8x4xf32>
    %cst_32 = arith.constant dense<0.000000e+00> : vector<8x256xf32>
    %58 = tpu.matmul %57, %55, %cst_32 {dimension_numbers = #tpu.dot_dimension_numbers<[1], [0], [0], [1], [0, 0, 1, 1], [], []>} : vector<8x4xf32>, vector<4x256xf32>, vector<8x256xf32> -> vector<8x256xf32>
    %59 = arith.addf %54, %58 : vector<8x256xf32>
    %c0_33 = arith.constant 0 : index
    %c129 = arith.constant 129 : index
    %60 = vector.load %arg7[%c0_33, %c129] : memref<4x512xf32, #tpu.memory_space<vmem>>, vector<4x256xf32>
    %61 = vector.broadcast %27 : vector<1x256xf32> to vector<4x256xf32>
    %62 = arith.mulf %60, %61 : vector<4x256xf32>
    %c1_34 = arith.constant 1 : index
    %c2_35 = arith.constant 2 : index
    %c0_36 = arith.constant 0 : index
    %c0_37 = arith.constant 0 : index
    %63 = vector.load %arg3[%c1_34, %c2_35, %c0_36, %c0_37] : memref<3x3x8x4xf32, #tpu.memory_space<vmem>>, vector<1x1x8x4xf32>
    %64 = vector.shape_cast %63 : vector<1x1x8x4xf32> to vector<8x4xf32>
    %cst_38 = arith.constant dense<0.000000e+00> : vector<8x256xf32>
    %65 = tpu.matmul %64, %62, %cst_38 {dimension_numbers = #tpu.dot_dimension_numbers<[1], [0], [0], [1], [0, 0, 1, 1], [], []>} : vector<8x4xf32>, vector<4x256xf32>, vector<8x256xf32> -> vector<8x256xf32>
    %66 = arith.addf %59, %65 : vector<8x256xf32>
    %c0_39 = arith.constant 0 : index
    %c143 = arith.constant 143 : index
    %67 = vector.load %arg7[%c0_39, %c143] : memref<4x512xf32, #tpu.memory_space<vmem>>, vector<4x256xf32>
    %68 = vector.broadcast %23 : vector<1x256xf32> to vector<4x256xf32>
    %69 = arith.mulf %67, %68 : vector<4x256xf32>
    %c2_40 = arith.constant 2 : index
    %c0_41 = arith.constant 0 : index
    %c0_42 = arith.constant 0 : index
    %c0_43 = arith.constant 0 : index
    %70 = vector.load %arg3[%c2_40, %c0_41, %c0_42, %c0_43] : memref<3x3x8x4xf32, #tpu.memory_space<vmem>>, vector<1x1x8x4xf32>
    %71 = vector.shape_cast %70 : vector<1x1x8x4xf32> to vector<8x4xf32>
    %cst_44 = arith.constant dense<0.000000e+00> : vector<8x256xf32>
    %72 = tpu.matmul %71, %69, %cst_44 {dimension_numbers = #tpu.dot_dimension_numbers<[1], [0], [0], [1], [0, 0, 1, 1], [], []>} : vector<8x4xf32>, vector<4x256xf32>, vector<8x256xf32> -> vector<8x256xf32>
    %73 = arith.addf %66, %72 : vector<8x256xf32>
    %c0_45 = arith.constant 0 : index
    %c144 = arith.constant 144 : index
    %74 = vector.load %arg7[%c0_45, %c144] : memref<4x512xf32, #tpu.memory_space<vmem>>, vector<4x256xf32>
    %c2_46 = arith.constant 2 : index
    %c1_47 = arith.constant 1 : index
    %c0_48 = arith.constant 0 : index
    %c0_49 = arith.constant 0 : index
    %75 = vector.load %arg3[%c2_46, %c1_47, %c0_48, %c0_49] : memref<3x3x8x4xf32, #tpu.memory_space<vmem>>, vector<1x1x8x4xf32>
    %76 = vector.shape_cast %75 : vector<1x1x8x4xf32> to vector<8x4xf32>
    %cst_50 = arith.constant dense<0.000000e+00> : vector<8x256xf32>
    %77 = tpu.matmul %76, %74, %cst_50 {dimension_numbers = #tpu.dot_dimension_numbers<[1], [0], [0], [1], [0, 0, 1, 1], [], []>} : vector<8x4xf32>, vector<4x256xf32>, vector<8x256xf32> -> vector<8x256xf32>
    %78 = arith.addf %73, %77 : vector<8x256xf32>
    %c0_51 = arith.constant 0 : index
    %c145 = arith.constant 145 : index
    %79 = vector.load %arg7[%c0_51, %c145] : memref<4x512xf32, #tpu.memory_space<vmem>>, vector<4x256xf32>
    %80 = vector.broadcast %27 : vector<1x256xf32> to vector<4x256xf32>
    %81 = arith.mulf %79, %80 : vector<4x256xf32>
    %c2_52 = arith.constant 2 : index
    %c2_53 = arith.constant 2 : index
    %c0_54 = arith.constant 0 : index
    %c0_55 = arith.constant 0 : index
    %82 = vector.load %arg3[%c2_52, %c2_53, %c0_54, %c0_55] : memref<3x3x8x4xf32, #tpu.memory_space<vmem>>, vector<1x1x8x4xf32>
    %83 = vector.shape_cast %82 : vector<1x1x8x4xf32> to vector<8x4xf32>
    %cst_56 = arith.constant dense<0.000000e+00> : vector<8x256xf32>
    %84 = tpu.matmul %83, %81, %cst_56 {dimension_numbers = #tpu.dot_dimension_numbers<[1], [0], [0], [1], [0, 0, 1, 1], [], []>} : vector<8x4xf32>, vector<4x256xf32>, vector<8x256xf32> -> vector<8x256xf32>
    %85 = arith.addf %78, %84 : vector<8x256xf32>
    %c0_57 = arith.constant 0 : index
    %c0_58 = arith.constant 0 : index
    %86 = vector.load %arg4[%c0_57, %c0_58] : memref<8x1xf32, #tpu.memory_space<vmem>>, vector<8x1xf32>
    %87 = vector.broadcast %86 : vector<8x1xf32> to vector<8x256xf32>
    %88 = arith.mulf %85, %87 : vector<8x256xf32>
    %c0_59 = arith.constant 0 : index
    %c0_60 = arith.constant 0 : index
    %89 = vector.load %arg5[%c0_59, %c0_60] : memref<8x1xf32, #tpu.memory_space<vmem>>, vector<8x1xf32>
    %90 = vector.broadcast %89 : vector<8x1xf32> to vector<8x256xf32>
    %91 = arith.addf %88, %90 : vector<8x256xf32>
    %cst_61 = arith.constant 0.000000e+00 : f32
    %92 = vector.broadcast %cst_61 : f32 to vector<8x256xf32>
    %93 = arith.maximumf %91, %92 : vector<8x256xf32>
    %c0_62 = arith.constant 0 : index
    %c0_63 = arith.constant 0 : index
    %c0_64 = arith.constant 0 : index
    %94 = vector.load %arg6[%c0_62, %c0_63, %c0_64] : memref<1x8x256xf32, #tpu.memory_space<vmem>>, vector<1x8x256xf32>
    %95 = vector.shape_cast %94 : vector<1x8x256xf32> to vector<8x256xf32>
    %96 = vector.shape_cast %93 : vector<8x256xf32> to vector<1x8x256xf32>
    tpu.vector_store %arg6[%c0_62, %c0_63, %c0_64], %96 {strides = array<i32>} : memref<1x8x256xf32, #tpu.memory_space<vmem>>, vector<1x8x256xf32>,
    return
  }
  func.func @transform_0(%arg0: i32, %arg1: i32) -> (i32, i32, i32) {
    %c0_i32 = arith.constant 0 : i32
    %c0_i32_0 = arith.constant 0 : i32
    %c0_i32_1 = arith.constant 0 : i32
    return %arg0, %c0_i32, %c0_i32_0 : i32, i32, i32
  }
  func.func @transform_1(%arg0: i32, %arg1: i32) -> (i32, i32, i32, i32) {
    %c0_i32 = arith.constant 0 : i32
    %c0_i32_0 = arith.constant 0 : i32
    %c0_i32_1 = arith.constant 0 : i32
    %c0_i32_2 = arith.constant 0 : i32
    return %c0_i32, %c0_i32_0, %arg1, %c0_i32_1 : i32, i32, i32, i32
  }
  func.func @transform_2(%arg0: i32, %arg1: i32) -> (i32, i32) {
    %c0_i32 = arith.constant 0 : i32
    %c0_i32_0 = arith.constant 0 : i32
    return %arg1, %c0_i32 : i32, i32
  }
  func.func @transform_3(%arg0: i32, %arg1: i32) -> (i32, i32) {
    %c0_i32 = arith.constant 0 : i32
    %c0_i32_0 = arith.constant 0 : i32
    return %arg1, %c0_i32 : i32, i32
  }
  func.func @transform_4(%arg0: i32, %arg1: i32) -> (i32, i32, i32) {
    %c0_i32 = arith.constant 0 : i32
    %c0_i32_0 = arith.constant 0 : i32
    return %arg0, %arg1, %c0_i32 : i32, i32, i32
  }
}

</mosaic_0001>

<llo_original>
// kernel: tpu_custom_call.1
$region0: #{tpu_custom_call.1}
  #allocation0 [shape = 'u32[]', space=smem, size = 0x4, offset = 0x4, fixed_abs, tag = 'smem constant byte address 0x4 - core index']
  #allocation1 [shape = 'u32[144,128]{1,0:T(1,128)}', space=vmem, size = 0x12000, scoped, tag = 'internal scratch']
  #allocation2 [shape = 'f32[4,512]{1,0:T(4,128)}', space=vmem, size = 0x2000, scoped, tag = 'scratch operand']
  %s0 = inlined_call_operand.vmem [shape: f32[2,4,256], index: 0, kind: input, shape index: {}]
  %s1 = inlined_call_operand.vmem [shape: f32[3,3,8,4], index: 1, kind: input, shape index: {}]
  %s2 = inlined_call_operand.vmem [shape: f32[8,1], index: 2, kind: input, shape index: {}]
  %s3 = inlined_call_operand.vmem [shape: f32[8,1], index: 3, kind: input, shape index: {}]
  %s4 = inlined_call_operand.hbm [shape: f32[2,8,256], index: 4, kind: output, shape index: {}]
  %s5 = sld [smem:[#allocation0]]
  $region53: #{tpu_custom_call.1} parent=0
    _
  %s7 = ssub.s32 1, %s5
  %s8 = scalar_select 0, %s7, %s5
  $region1: #{tpu_custom_call.1} parent=0
    #allocation3 [shape = 'u8[16384]{0}', space=vmem, size = 0x4000, scoped, tag = 'output window, operand 0']
    #allocation4 [shape = 's32[2]{0}', space=sflag, size = 0x8, scoped, tag = 'scoped memory for tpu_custom_call.1']
    %9 = vsyncpa [#allocation4], 0
    %s10 = scalar_lea.sflag [#allocation4], 1
    %11 = vsyncpa %s10, 0
    loop: start=0, step=1, limit=4
    $region2: #{tpu_custom_call.1} parent=1 // loop_pre_header
      _
    $region3: #{tpu_custom_call.1} parent=1 // loop_header
      %s13 = sphi 0, %s17
      %p14 = scmp.ge.s32.totalorder %s13, 4
      %s20 = sphi 0, %s32
      %s21 = sphi 0, %s28
      %s22 = sphi 0, %s20
      %s23 = sphi 0, %s21
      %s24 = sphi 0, %s22
      %s25 = sphi 0, %s23
      %s35 = sphi 0, %s37
      %s38 = sphi 0, %s35
      %s39 = sphi 0, %s38
      %s55 = sphi 0, %s39
      %s61 = sphi 0, %s63
      %s64 = sphi 0, %s61
      %s65 = sphi 0, %s64
      %s81 = sphi 0, %s65
      %s87 = sphi 0, %s89
      %s90 = sphi 0, %s87
      %s91 = sphi 0, %s90
      %s107 = sphi 0, %s91
      %s113 = sphi 0, %s115
      %s116 = sphi 0, %s113
      %s117 = sphi 0, %s116
      %s133 = sphi 0, %s117
      %s141 = sphi 0, %s143
      %s144 = sphi 0, %s141
      %s145 = sphi 0, %s144
      %s161 = sphi 0, %s145
    $region4: #{tpu_custom_call.1} parent=1 // loop_header_branch
      %16 = sbr.rel (%p14) target = $region8
    $region5: #{tpu_custom_call.1} parent=1 // loop_body
      %s18 = ssub.s32 %s13, 1
      %s19 = ssub.s32 %s13, 2
      %s26 = sadd.s32 1, %s21
      %p27 = scmp.ge.s32.totalorder %s26, 1
      %s28 = scalar_select %p27, 0, %s26
      %s29 = sadd.s32 1, %s20
      %s30 = scalar_select %p27, %s29, %s20
      %p31 = scmp.ge.s32.totalorder %s30, 2
      %s32 = scalar_select %p31, 0, %s30
      %s33 = ssub.s32 %s20, %s32
      %p34 = scmp.eq.s32.totalorder %s33, 0
      %s36 = sadd.s32 %s35, 1
      %s37 = scalar_select %p34, %s35, %s36
      %p40 = pneg %p34
      %p41 = scmp.eq.s32.totalorder %s13, 1
      %p42 = por %p40, %p41
      %p43 = scmp.ne.s32.totalorder %s35, %s38
      %p44 = scmp.eq.s32.totalorder %s13, 0
      %p45 = por %p43, %p44
      %p46 = scmp.ne.s32.totalorder %s35, %s38
      %p47 = scmp.eq.s32.totalorder %s18, 1
      %p48 = por %p46, %p47
      %p49 = scmp.ne.s32.totalorder %s38, %s39
      %p50 = scmp.eq.s32.totalorder %s18, 0
      %p51 = por %p49, %p50
      %p52 = scmp.ne.s32.totalorder %s38, %s39
      %p53 = scmp.eq.s32.totalorder %s19, 1
      %p54 = por %p52, %p53
      %p56 = scmp.ne.s32.totalorder %s39, %s55
      %p57 = scmp.eq.s32.totalorder %s19, 0
      %p58 = por %p56, %p57
      %s59 = ssub.s32 %s21, %s28
      %p60 = scmp.eq.s32.totalorder %s59, 0
      %s62 = sadd.s32 %s61, 1
      %s63 = scalar_select %p60, %s61, %s62
      %p66 = pneg %p60
      %p67 = scmp.eq.s32.totalorder %s13, 1
      %p68 = por %p66, %p67
      %p69 = scmp.ne.s32.totalorder %s61, %s64
      %p70 = scmp.eq.s32.totalorder %s13, 0
      %p71 = por %p69, %p70
      %p72 = scmp.ne.s32.totalorder %s61, %s64
      %p73 = scmp.eq.s32.totalorder %s18, 1
      %p74 = por %p72, %p73
      %p75 = scmp.ne.s32.totalorder %s64, %s65
      %p76 = scmp.eq.s32.totalorder %s18, 0
      %p77 = por %p75, %p76
      %p78 = scmp.ne.s32.totalorder %s64, %s65
      %p79 = scmp.eq.s32.totalorder %s19, 1
      %p80 = por %p78, %p79
      %p82 = scmp.ne.s32.totalorder %s65, %s81
      %p83 = scmp.eq.s32.totalorder %s19, 0
      %p84 = por %p82, %p83
      %s85 = ssub.s32 %s21, %s28
      %p86 = scmp.eq.s32.totalorder %s85, 0
      %s88 = sadd.s32 %s87, 1
      %s89 = scalar_select %p86, %s87, %s88
      %p92 = pneg %p86
      %p93 = scmp.eq.s32.totalorder %s13, 1
      %p94 = por %p92, %p93
      %p95 = scmp.ne.s32.totalorder %s87, %s90
      %p96 = scmp.eq.s32.totalorder %s13, 0
      %p97 = por %p95, %p96
      %p98 = scmp.ne.s32.totalorder %s87, %s90
      %p99 = scmp.eq.s32.totalorder %s18, 1
      %p100 = por %p98, %p99
      %p101 = scmp.ne.s32.totalorder %s90, %s91
      %p102 = scmp.eq.s32.totalorder %s18, 0
      %p103 = por %p101, %p102
      %p104 = scmp.ne.s32.totalorder %s90, %s91
      %p105 = scmp.eq.s32.totalorder %s19, 1
      %p106 = por %p104, %p105
      %p108 = scmp.ne.s32.totalorder %s91, %s107
      %p109 = scmp.eq.s32.totalorder %s19, 0
      %p110 = por %p108, %p109
      %s111 = ssub.s32 %s21, %s28
      %p112 = scmp.eq.s32.totalorder %s111, 0
      %s114 = sadd.s32 %s113, 1
      %s115 = scalar_select %p112, %s113, %s114
      %p118 = pneg %p112
      %p119 = scmp.eq.s32.totalorder %s13, 1
      %p120 = por %p118, %p119
      %p121 = scmp.ne.s32.totalorder %s113, %s116
      %p122 = scmp.eq.s32.totalorder %s13, 0
      %p123 = por %p121, %p122
      %p124 = scmp.ne.s32.totalorder %s113, %s116
      %p125 = scmp.eq.s32.totalorder %s18, 1
      %p126 = por %p124, %p125
      %p127 = scmp.ne.s32.totalorder %s116, %s117
      %p128 = scmp.eq.s32.totalorder %s18, 0
      %p129 = por %p127, %p128
      %p130 = scmp.ne.s32.totalorder %s116, %s117
      %p131 = scmp.eq.s32.totalorder %s19, 1
      %p132 = por %p130, %p131
      %p134 = scmp.ne.s32.totalorder %s117, %s133
      %p135 = scmp.eq.s32.totalorder %s19, 0
      %p136 = por %p134, %p135
      %s137 = ssub.s32 %s20, %s32
      %s138 = ssub.s32 %s21, %s28
      %s139 = sor.u32 %s137, %s138
      %p140 = scmp.eq.s32.totalorder %s139, 0
      %s142 = sadd.s32 %s141, 1
      %s143 = scalar_select %p140, %s141, %s142
      %p146 = pneg %p140
      %p147 = scmp.eq.s32.totalorder %s13, 1
      %p148 = por %p146, %p147
      %p149 = scmp.ne.s32.totalorder %s141, %s144
      %p150 = scmp.eq.s32.totalorder %s13, 0
      %p151 = por %p149, %p150
      %p152 = scmp.ne.s32.totalorder %s141, %s144
      %p153 = scmp.eq.s32.totalorder %s18, 1
      %p154 = por %p152, %p153
      %p155 = scmp.ne.s32.totalorder %s144, %s145
      %p156 = scmp.eq.s32.totalorder %s18, 0
      %p157 = por %p155, %p156
      %p158 = scmp.ne.s32.totalorder %s144, %s145
      %p159 = scmp.eq.s32.totalorder %s19, 1
      %p160 = por %p158, %p159
      %p162 = scmp.ne.s32.totalorder %s145, %s161
      %p163 = scmp.eq.s32.totalorder %s19, 0
      %p164 = por %p162, %p163
      %p165 = scmp.le.s32.totalorder 1, %s13
      %p166 = scmp.lt.s32.totalorder %s13, 3
      %p167 = pnand %p165, %p166
      %p168 = pneg %p167
      // Predicated region
      $region9: #{tpu_custom_call.1} parent=5 // pred_check
        _
      $region10: #{tpu_custom_call.1} parent=5 // pred_check_branch
        %170 = sbr.rel (%p167) target = $region12
      $region11: #{tpu_custom_call.1} parent=5 // pred_region
        %s171 = ssub.s32 %s13, 1
        // Predicated region
        $region13: #{tpu_custom_call.1} parent=11 // pred_check
          %p172 = pneg %p77
        $region14: #{tpu_custom_call.1} parent=11 // pred_check_branch
          %174 = sbr.rel (%p172) target = $region16
        $region15: #{tpu_custom_call.1} parent=11 // pred_region
          %p175 = scmp.lt.s32.totalorder %s23, 0
          %s176 = scalar_select %p175, %s23, 0
          %s177 = smul.addr %s176, 8
          %s178 = scalar_lea.vmem %s1, %s177
        $region16: #{tpu_custom_call.1} parent=11 // pred_fallthru
          _
        // Predicated region
        $region17: #{tpu_custom_call.1} parent=11 // pred_check
          %p179 = pneg %p103
        $region18: #{tpu_custom_call.1} parent=11 // pred_check_branch
          %181 = sbr.rel (%p179) target = $region20
        $region19: #{tpu_custom_call.1} parent=11 // pred_region
          %p182 = scmp.lt.s32.totalorder %s23, 0
          %s183 = scalar_select %p182, %s23, 0
          %s184 = smul.addr %s183, 8
          %s185 = scalar_lea.vmem %s2, %s184
        $region20: #{tpu_custom_call.1} parent=11 // pred_fallthru
          _
        // Predicated region
        $region21: #{tpu_custom_call.1} parent=11 // pred_check
          %p186 = pneg %p129
        $region22: #{tpu_custom_call.1} parent=11 // pred_check_branch
          %188 = sbr.rel (%p186) target = $region24
        $region23: #{tpu_custom_call.1} parent=11 // pred_region
          %p189 = scmp.lt.s32.totalorder %s23, 0
          %s190 = scalar_select %p189, %s23, 0
          %s191 = smul.addr %s190, 8
          %s192 = scalar_lea.vmem %s3, %s191
        $region24: #{tpu_custom_call.1} parent=11 // pred_fallthru
          _
      $region12: #{tpu_custom_call.1} parent=5 // pred_fallthru
        _
      %p193 = scmp.lt.s32.totalorder %s13, 2
      // Predicated region
      $region25: #{tpu_custom_call.1} parent=5 // pred_check
        %p194 = pneg %p193
      $region26: #{tpu_custom_call.1} parent=5 // pred_check_branch
        %196 = sbr.rel (%p194) target = $region28
      $region27: #{tpu_custom_call.1} parent=5 // pred_region
        // Predicated region
        $region29: #{tpu_custom_call.1} parent=27 // pred_check
          %p197 = pneg %p45
        $region30: #{tpu_custom_call.1} parent=27 // pred_check_branch
          %199 = sbr.rel (%p197) target = $region32
        $region31: #{tpu_custom_call.1} parent=27 // pred_region
          %p200 = scmp.lt.s32.totalorder %s20, 1
          %s201 = scalar_select %p200, %s20, 1
          %s202 = smul.addr %s201, 2
          %s203 = smul.addr %s202, 4
          %s204 = scalar_lea.vmem %s0, %s203
        $region32: #{tpu_custom_call.1} parent=27 // pred_fallthru
          _
      $region28: #{tpu_custom_call.1} parent=5 // pred_fallthru
        _
      %p205 = scmp.le.s32.totalorder 1, %s13
      %p206 = scmp.lt.s32.totalorder %s13, 3
      %p207 = pnand %p205, %p206
      %p208 = pneg %p207
      // Predicated region
      $region33: #{tpu_custom_call.1} parent=5 // pred_check
        _
      $region34: #{tpu_custom_call.1} parent=5 // pred_check_branch
        %210 = sbr.rel (%p207) target = $region36
      $region35: #{tpu_custom_call.1} parent=5 // pred_region
        %s211 = ssub.s32 %s13, 1
        %p212 = scmp.lt.s32.totalorder %s22, 1
        %s213 = scalar_select %p212, %s22, 1
        %s214 = smul.addr %s213, 2
        %s215 = smul.addr %s214, 4
        %s216 = scalar_lea.vmem %s0, %s215
        %p217 = pneg %p51
        %p218 = pneg %p48
        %p219 = scmp.lt.s32.totalorder %s23, 0
        %s220 = scalar_select %p219, %s23, 0
        %s221 = smul.addr %s220, 8
        %s222 = scalar_lea.vmem %s1, %s221
        %p223 = pneg %p77
        %p224 = pneg %p74
        %p225 = scmp.lt.s32.totalorder %s23, 0
        %s226 = scalar_select %p225, %s23, 0
        %s227 = smul.addr %s226, 8
        %s228 = scalar_lea.vmem %s2, %s227
        %p229 = pneg %p103
        %p230 = pneg %p100
        %p231 = scmp.lt.s32.totalorder %s23, 0
        %s232 = scalar_select %p231, %s23, 0
        %s233 = smul.addr %s232, 8
        %s234 = scalar_lea.vmem %s3, %s233
        %p235 = pneg %p129
        %p236 = pneg %p126
        %p237 = pneg %p157
        %p238 = pneg %p154
        %s239 = sand.u32 %s144, 1
        %s240 = scalar_lea.sflag [#allocation4], %s239
        %s241 = sand.u32 %s144, 1
        %s242 = smul.addr %s241, 16
        %s243 = scalar_lea.vmem [#allocation3], %s242
        %p244 = scmp.lt.s32.totalorder %s22, 1
        %s245 = scalar_select %p244, %s22, 1
        %s246 = smul.addr %s245, 2
        %s247 = smul.addr %s246, 4
        %s248 = scalar_lea.vmem %s0, %s247
        %p249 = scmp.lt.s32.totalorder %s23, 0
        %s250 = scalar_select %p249, %s23, 0
        %s251 = smul.addr %s250, 8
        %s252 = scalar_lea.vmem %s1, %s251
        %p253 = scmp.lt.s32.totalorder %s23, 0
        %s254 = scalar_select %p253, %s23, 0
        %s255 = smul.addr %s254, 8
        %s256 = scalar_lea.vmem %s2, %s255
        %p257 = scmp.lt.s32.totalorder %s23, 0
        %s258 = scalar_select %p257, %s23, 0
        %s259 = smul.addr %s258, 8
        %s260 = scalar_lea.vmem %s3, %s259
        %p261 = scmp.eq.s32.totalorder %s23, 0
        // Predicated region
        $region37: #{tpu_custom_call.1} parent=35 // pred_check
          %p262 = pneg %p261
        $region38: #{tpu_custom_call.1} parent=35 // pred_check_branch
          %264 = sbr.rel (%p262) target = $region40
        $region39: #{tpu_custom_call.1} parent=35 // pred_region
          %265 = vst [vmem:[#allocation2] sm:$0xf] 0.0
          %266 = vst [vmem:[#allocation2 + $0xc] sm:$0xf] 0.0
          %v267 = vld [vmem:[%s248] sm:$0xff]
          %268 = vst [vmem:[#allocation2 + $0x4] sm:$0xff] %v267
        $region40: #{tpu_custom_call.1} parent=35 // pred_fallthru
          _
        %v269 = vlaneseq
        %v270 = vand.u32 %v269, 127
        %v271 = vadd.s32 %v270, 128
        %vm272 = vcmp.lt.s32.totalorder %v270, 0
        %v273 = vsub.s32 0, %v270
        %v274 = vsel %vm272, %v273, %v270
        %v275 = vshrl.u32 %v274, 4
        %v276 = vand.u32 %v274, 15
        %v277 = vsub.s32 0, %v276
        %v278 = vsel %vm272, %v277, %v276
        %vm279 = vcmp.lt.s32.totalorder %v271, 0
        %v280 = vsub.s32 0, %v271
        %v281 = vsel %vm279, %v280, %v271
        %v282 = vshrl.u32 %v281, 4
        %v283 = vand.u32 %v281, 15
        %v284 = vsub.s32 0, %v283
        %v285 = vsel %vm279, %v284, %v283
        %vm286 = vcmp.ne.s32.totalorder %v278, 0
        %vm287 = vcmp.ne.s32.totalorder %v285, 0
        %vm288 = vcmp.lt.s32.totalorder %v278, 0
        %vm289 = vcmp.lt.s32.totalorder %v285, 0
        %vm290 = vmand %vm288, %vm286
        %vm291 = vmand %vm289, %vm287
        %v292 = vadd.s32 %v278, 16
        %v293 = vadd.s32 %v285, 16
        %v294 = vsel %vm290, %v292, %v278
        %v295 = vsel %vm291, %v293, %v285
        %vm296 = vcmp.ne.s32.totalorder %v294, 0
        %vm297 = vcmp.ne.s32.totalorder %v295, 0
        %v298 = vsel %vm296, 1, 0
        %v299 = vsel %vm297, 1, 0
        %v300 = vcvt.s32.f32 %v298
        %v301 = vcvt.s32.f32 %v299
        %vm302 = vcmp.ne.s32.totalorder %v294, 15
        %vm303 = vcmp.ne.s32.totalorder %v295, 15
        %v304 = vsel %vm302, 1, 0
        %v305 = vsel %vm303, 1, 0
        %v306 = vcvt.s32.f32 %v304
        %v307 = vcvt.s32.f32 %v305
        %v308 = vld [vmem:[#allocation2] sm:$0xff]
        %v309 = vld [vmem:[#allocation2 + $0x8] sm:$0xf]
        %v312 = vcombine.low %v300, %v301
        %313 = vrot.lane.b32.xlu0 %v312, 111
        %v314 = vpop.permute.xlu0 %313
        %v315 = vrot.slane %v314, 4
        %vm316 = vcmask 908288
        %v317 = vsel %vm316, %v315, %v314
        %v320 = vmul.f32 %v308, %v317
        %v321 = vmul.f32 %v309, %v315
        %v322 = vld [vmem:[%s252] sm:$0xff]
        %s323 = scalar_lea.vmem %s252, 8
        %v324 = vld [vmem:[%s323] sm:$0xff]
        %v327 = vcombine.high %v308, %v308
        %328 = vrot.lane.b32.xlu0 %v308, 16
        %v329 = vpop.permute.xlu0 %328
        %330 = vrot.lane.b32.xlu0 %v327, 16
        %v331 = vpop.permute.xlu0 %330
        %332 = vrot.lane.b32.xlu0 %v309, 16
        %v333 = vpop.permute.xlu0 %332
        %vm334 = vcmask 130048
        %v335 = vsel %vm334, %v329, %v331
        %v336 = vsel %vm334, %v331, %v333
        %vm337 = vcmask 31744
        %v339 = vsel %vm337, %v324, 0
        %vm341 = vcmask 1043456
        %v342 = vsel %vm341, %v335, 0
        %v344 = vsel %vm341, %v336, 0
        %346 = vmatprep.subr.mxu0 %v344
        %347 = vmatpush1.msra.mxu0 %v342
        %348 = vmatprep.subr.mxu0 0.0
        %349 = vmatpush1.msra.mxu0 0.0
        %350 = vmatprep.subr.mxu0 0.0
        %351 = vmatpush1.msra.mxu0 0.0
        %352 = vmatprep.subr.mxu0 0.0
        %353 = vmatpush1.msra.mxu0 0.0
        %354 = vmatprep.subr.mxu0 0.0
        %355 = vmatpush1.msra.mxu0 0.0
        %356 = vmatprep.subr.mxu0 0.0
        %357 = vmatpush1.msra.mxu0 0.0
        %358 = vmatprep.subr.mxu0 0.0
        %359 = vmatpush1.msra.mxu0 0.0
        %360 = vmatprep.subr.mxu0 0.0
        %361 = vmatpush1.msra.mxu0 0.0
        %362 = vmatprep.subr.mxu0 0.0
        %363 = vmatpush1.msra.mxu0 0.0
        %364 = vmatprep.subr.mxu0 0.0
        %365 = vmatpush1.msra.mxu0 0.0
        %366 = vmatprep.subr.mxu0 0.0
        %367 = vmatpush1.msra.mxu0 0.0
        %368 = vmatprep.subr.mxu0 0.0
        %369 = vmatpush1.msra.mxu0 0.0
        %370 = vmatprep.subr.mxu0 0.0
        %371 = vmatpush1.msra.mxu0 0.0
        %372 = vmatprep.subr.mxu0 0.0
        %373 = vmatpush1.msra.mxu0 0.0
        %374 = vmatprep.subr.mxu0 0.0
        %375 = vmatpush1.msra.mxu0 0.0
        %376 = vmatprep.subr.mxu0 0.0
        %377 = vmatpush1.msra.mxu0 0.0
        %378 = vmatprep.subr.mxu0 0.0
        %379 = vmatpush1.msra.mxu0 0.0
        %380 = vmatprep.subr.mxu0 0.0
        %381 = vmatpush1.msra.mxu0 0.0
        %382 = vmatprep.subr.mxu0 0.0
        %383 = vmatpush1.msra.mxu0 0.0
        %384 = vmatprep.subr.mxu0 0.0
        %385 = vmatpush1.msra.mxu0 0.0
        %386 = vmatprep.subr.mxu0 0.0
        %387 = vmatpush1.msra.mxu0 0.0
        %388 = vmatprep.subr.mxu0 0.0
        %389 = vmatpush1.msra.mxu0 0.0
        %390 = vmatprep.subr.mxu0 0.0
        %391 = vmatpush1.msra.mxu0 0.0
        %392 = vmatprep.subr.mxu0 0.0
        %393 = vmatpush1.msra.mxu0 0.0
        %394 = vmatprep.subr.mxu0 0.0
        %395 = vmatpush1.msra.mxu0 0.0
        %396 = vmatprep.subr.mxu0 0.0
        %397 = vmatpush1.msra.mxu0 0.0
        %398 = vmatprep.subr.mxu0 0.0
        %399 = vmatpush1.msra.mxu0 0.0
        %400 = vmatprep.subr.mxu0 0.0
        %401 = vmatpush1.msra.mxu0 0.0
        %402 = vmatprep.subr.mxu0 0.0
        %403 = vmatpush1.msra.mxu0 0.0
        %404 = vmatprep.subr.mxu0 0.0
        %405 = vmatpush1.msra.mxu0 0.0
        %406 = vmatprep.subr.mxu0 0.0
        %407 = vmatpush1.msra.mxu0 0.0
        %408 = vmatprep.subr.mxu0 0.0
        %409 = vmatpush1.msra.mxu0 0.0
        %410 = vmatprep.mubr.f32.mxu0 0.0
        %411 = vmatmul.mubr.f32.gmra.mrb[0].mxu0 %v339
        %v412 = vpop.f32.mrb[0].mxu0
        %v413 = vadd.f32 0.0, %v412
        %v414 = vpop.f32.mrb[0].mxu0
        %v415 = vadd.f32 0.0, %v414
        %416 = vdwg.mxu0
        %v419 = vcombine.high %v320, %v320
        %420 = vrot.lane.b32.xlu0 %v320, 17
        %v421 = vpop.permute.xlu0 %420
        %422 = vrot.lane.b32.xlu0 %v419, 17
        %v423 = vpop.permute.xlu0 %422
        %424 = vrot.lane.b32.xlu0 %v321, 17
        %v425 = vpop.permute.xlu0 %424
        %vm426 = vcmask 138240
        %v427 = vsel %vm426, %v421, %v423
        %v428 = vsel %vm426, %v423, %v425
        %v430 = vsel %vm337, %v322, 0
        %v432 = vsel %vm341, %v427, 0
        %v434 = vsel %vm341, %v428, 0
        %436 = vmatprep.subr.mxu0 %v434
        %437 = vmatpush1.msra.mxu0 %v432
        %438 = vmatprep.subr.mxu0 0.0
        %439 = vmatpush1.msra.mxu0 0.0
        %440 = vmatprep.subr.mxu0 0.0
        %441 = vmatpush1.msra.mxu0 0.0
        %442 = vmatprep.subr.mxu0 0.0
        %443 = vmatpush1.msra.mxu0 0.0
        %444 = vmatprep.subr.mxu0 0.0
        %445 = vmatpush1.msra.mxu0 0.0
        %446 = vmatprep.subr.mxu0 0.0
        %447 = vmatpush1.msra.mxu0 0.0
        %448 = vmatprep.subr.mxu0 0.0
        %449 = vmatpush1.msra.mxu0 0.0
        %450 = vmatprep.subr.mxu0 0.0
        %451 = vmatpush1.msra.mxu0 0.0
        %452 = vmatprep.subr.mxu0 0.0
        %453 = vmatpush1.msra.mxu0 0.0
        %454 = vmatprep.subr.mxu0 0.0
        %455 = vmatpush1.msra.mxu0 0.0
        %456 = vmatprep.subr.mxu0 0.0
        %457 = vmatpush1.msra.mxu0 0.0
        %458 = vmatprep.subr.mxu0 0.0
        %459 = vmatpush1.msra.mxu0 0.0
        %460 = vmatprep.subr.mxu0 0.0
        %461 = vmatpush1.msra.mxu0 0.0
        %462 = vmatprep.subr.mxu0 0.0
        %463 = vmatpush1.msra.mxu0 0.0
        %464 = vmatprep.subr.mxu0 0.0
        %465 = vmatpush1.msra.mxu0 0.0
        %466 = vmatprep.subr.mxu0 0.0
        %467 = vmatpush1.msra.mxu0 0.0
        %468 = vmatprep.subr.mxu0 0.0
        %469 = vmatpush1.msra.mxu0 0.0
        %470 = vmatprep.subr.mxu0 0.0
        %471 = vmatpush1.msra.mxu0 0.0
        %472 = vmatprep.subr.mxu0 0.0
        %473 = vmatpush1.msra.mxu0 0.0
        %474 = vmatprep.subr.mxu0 0.0
        %475 = vmatpush1.msra.mxu0 0.0
        %476 = vmatprep.subr.mxu0 0.0
        %477 = vmatpush1.msra.mxu0 0.0
        %478 = vmatprep.subr.mxu0 0.0
        %479 = vmatpush1.msra.mxu0 0.0
        %480 = vmatprep.subr.mxu0 0.0
        %481 = vmatpush1.msra.mxu0 0.0
        %482 = vmatprep.subr.mxu0 0.0
        %483 = vmatpush1.msra.mxu0 0.0
        %484 = vmatprep.subr.mxu0 0.0
        %485 = vmatpush1.msra.mxu0 0.0
        %486 = vmatprep.subr.mxu0 0.0
        %487 = vmatpush1.msra.mxu0 0.0
        %488 = vmatprep.subr.mxu0 0.0
        %489 = vmatpush1.msra.mxu0 0.0
        %490 = vmatprep.subr.mxu0 0.0
        %491 = vmatpush1.msra.mxu0 0.0
        %492 = vmatprep.subr.mxu0 0.0
        %493 = vmatpush1.msra.mxu0 0.0
        %494 = vmatprep.subr.mxu0 0.0
        %495 = vmatpush1.msra.mxu0 0.0
        %496 = vmatprep.subr.mxu0 0.0
        %497 = vmatpush1.msra.mxu0 0.0
        %498 = vmatprep.subr.mxu0 0.0
        %499 = vmatpush1.msra.mxu0 0.0
        %500 = vmatprep.mubr.f32.mxu0 0.0
        %501 = vmatmul.mubr.f32.gmra.mrb[0].mxu0 %v430
        %v502 = vpop.f32.mrb[0].mxu0
        %v503 = vadd.f32 %v413, %v502
        %v504 = vpop.f32.mrb[0].mxu0
        %v505 = vadd.f32 %v415, %v504
        %506 = vdwg.mxu0
        %v507 = vld [vmem:[#allocation2] sm:$0xff]
        %v508 = vld [vmem:[#allocation2 + $0x8] sm:$0xf]
        %v511 = vcombine.low %v306, %v307
        %512 = vrot.lane.b32.xlu0 %v511, 113
        %v513 = vpop.permute.xlu0 %512
        %v514 = vrot.slane %v513, 4
        %vm515 = vcmask 924672
        %v516 = vsel %vm515, %v514, %v513
        %v519 = vmul.f32 %v507, %v516
        %v520 = vmul.f32 %v508, %v514
        %s521 = scalar_lea.vmem %s252, 16
        %v522 = vld [vmem:[%s521] sm:$0xff]
        %v525 = vcombine.high %v519, %v519
        %526 = vrot.lane.b32.xlu0 %v519, 15
        %v527 = vpop.permute.xlu0 %526
        %528 = vrot.lane.b32.xlu0 %v525, 15
        %v529 = vpop.permute.xlu0 %528
        %530 = vrot.lane.b32.xlu0 %v520, 15
        %v531 = vpop.permute.xlu0 %530
        %vm532 = vcmask 121856
        %v533 = vsel %vm532, %v527, %v529
        %v534 = vsel %vm532, %v529, %v531
        %v536 = vsel %vm337, %v522, 0
        %v538 = vsel %vm341, %v533, 0
        %v540 = vsel %vm341, %v534, 0
        %542 = vmatprep.subr.mxu0 %v540
        %543 = vmatpush1.msra.mxu0 %v538
        %544 = vmatprep.subr.mxu0 0.0
        %545 = vmatpush1.msra.mxu0 0.0
        %546 = vmatprep.subr.mxu0 0.0
        %547 = vmatpush1.msra.mxu0 0.0
        %548 = vmatprep.subr.mxu0 0.0
        %549 = vmatpush1.msra.mxu0 0.0
        %550 = vmatprep.subr.mxu0 0.0
        %551 = vmatpush1.msra.mxu0 0.0
        %552 = vmatprep.subr.mxu0 0.0
        %553 = vmatpush1.msra.mxu0 0.0
        %554 = vmatprep.subr.mxu0 0.0
        %555 = vmatpush1.msra.mxu0 0.0
        %556 = vmatprep.subr.mxu0 0.0
        %557 = vmatpush1.msra.mxu0 0.0
        %558 = vmatprep.subr.mxu0 0.0
        %559 = vmatpush1.msra.mxu0 0.0
        %560 = vmatprep.subr.mxu0 0.0
        %561 = vmatpush1.msra.mxu0 0.0
        %562 = vmatprep.subr.mxu0 0.0
        %563 = vmatpush1.msra.mxu0 0.0
        %564 = vmatprep.subr.mxu0 0.0
        %565 = vmatpush1.msra.mxu0 0.0
        %566 = vmatprep.subr.mxu0 0.0
        %567 = vmatpush1.msra.mxu0 0.0
        %568 = vmatprep.subr.mxu0 0.0
        %569 = vmatpush1.msra.mxu0 0.0
        %570 = vmatprep.subr.mxu0 0.0
        %571 = vmatpush1.msra.mxu0 0.0
        %572 = vmatprep.subr.mxu0 0.0
        %573 = vmatpush1.msra.mxu0 0.0
        %574 = vmatprep.subr.mxu0 0.0
        %575 = vmatpush1.msra.mxu0 0.0
        %576 = vmatprep.subr.mxu0 0.0
        %577 = vmatpush1.msra.mxu0 0.0
        %578 = vmatprep.subr.mxu0 0.0
        %579 = vmatpush1.msra.mxu0 0.0
        %580 = vmatprep.subr.mxu0 0.0
        %581 = vmatpush1.msra.mxu0 0.0
        %582 = vmatprep.subr.mxu0 0.0
        %583 = vmatpush1.msra.mxu0 0.0
        %584 = vmatprep.subr.mxu0 0.0
        %585 = vmatpush1.msra.mxu0 0.0
        %586 = vmatprep.subr.mxu0 0.0
        %587 = vmatpush1.msra.mxu0 0.0
        %588 = vmatprep.subr.mxu0 0.0
        %589 = vmatpush1.msra.mxu0 0.0
        %590 = vmatprep.subr.mxu0 0.0
        %591 = vmatpush1.msra.mxu0 0.0
        %592 = vmatprep.subr.mxu0 0.0
        %593 = vmatpush1.msra.mxu0 0.0
        %594 = vmatprep.subr.mxu0 0.0
        %595 = vmatpush1.msra.mxu0 0.0
        %596 = vmatprep.subr.mxu0 0.0
        %597 = vmatpush1.msra.mxu0 0.0
        %598 = vmatprep.subr.mxu0 0.0
        %599 = vmatpush1.msra.mxu0 0.0
        %600 = vmatprep.subr.mxu0 0.0
        %601 = vmatpush1.msra.mxu0 0.0
        %602 = vmatprep.subr.mxu0 0.0
        %603 = vmatpush1.msra.mxu0 0.0
        %604 = vmatprep.subr.mxu0 0.0
        %605 = vmatpush1.msra.mxu0 0.0
        %606 = vmatprep.mubr.f32.mxu0 0.0
        %607 = vmatmul.mubr.f32.gmra.mrb[0].mxu0 %v536
        %v608 = vpop.f32.mrb[0].mxu0
        %v609 = vadd.f32 0.0, %v608
        %v610 = vpop.f32.mrb[0].mxu0
        %v611 = vadd.f32 0.0, %v610
        %612 = vdwg.mxu0
        %v613 = vadd.f32 %v503, %v609
        %v614 = vadd.f32 %v505, %v611
        %v615 = vld [vmem:[#allocation2] sm:$0xff]
        %v616 = vld [vmem:[#allocation2 + $0x8] sm:$0xf]
        %617 = vrot.lane.b32.xlu0 %v312, 127
        %v618 = vpop.permute.xlu0 %617
        %v619 = vrot.slane %v618, 4
        %vm620 = vcmask 1039360
        %v621 = vsel %vm620, %v619, %v618
        %v624 = vmul.f32 %v615, %v621
        %v625 = vmul.f32 %v616, %v619
        %s626 = scalar_lea.vmem %s252, 24
        %v627 = vld [vmem:[%s626] sm:$0xff]
        %v630 = vcombine.high %v624, %v624
        %631 = vrot.lane.b32.xlu0 %v624, 1
        %v632 = vpop.permute.xlu0 %631
        %633 = vrot.lane.b32.xlu0 %v630, 1
        %v634 = vpop.permute.xlu0 %633
        %635 = vrot.lane.b32.xlu0 %v625, 1
        %v636 = vpop.permute.xlu0 %635
        %vm637 = vcmask 7168
        %v638 = vsel %vm637, %v632, %v634
        %v639 = vsel %vm637, %v634, %v636
        %v641 = vsel %vm337, %v627, 0
        %v643 = vsel %vm341, %v638, 0
        %v645 = vsel %vm341, %v639, 0
        %647 = vmatprep.subr.mxu0 %v645
        %648 = vmatpush1.msra.mxu0 %v643
        %649 = vmatprep.subr.mxu0 0.0
        %650 = vmatpush1.msra.mxu0 0.0
        %651 = vmatprep.subr.mxu0 0.0
        %652 = vmatpush1.msra.mxu0 0.0
        %653 = vmatprep.subr.mxu0 0.0
        %654 = vmatpush1.msra.mxu0 0.0
        %655 = vmatprep.subr.mxu0 0.0
        %656 = vmatpush1.msra.mxu0 0.0
        %657 = vmatprep.subr.mxu0 0.0
        %658 = vmatpush1.msra.mxu0 0.0
        %659 = vmatprep.subr.mxu0 0.0
        %660 = vmatpush1.msra.mxu0 0.0
        %661 = vmatprep.subr.mxu0 0.0
        %662 = vmatpush1.msra.mxu0 0.0
        %663 = vmatprep.subr.mxu0 0.0
        %664 = vmatpush1.msra.mxu0 0.0
        %665 = vmatprep.subr.mxu0 0.0
        %666 = vmatpush1.msra.mxu0 0.0
        %667 = vmatprep.subr.mxu0 0.0
        %668 = vmatpush1.msra.mxu0 0.0
        %669 = vmatprep.subr.mxu0 0.0
        %670 = vmatpush1.msra.mxu0 0.0
        %671 = vmatprep.subr.mxu0 0.0
        %672 = vmatpush1.msra.mxu0 0.0
        %673 = vmatprep.subr.mxu0 0.0
        %674 = vmatpush1.msra.mxu0 0.0
        %675 = vmatprep.subr.mxu0 0.0
        %676 = vmatpush1.msra.mxu0 0.0
        %677 = vmatprep.subr.mxu0 0.0
        %678 = vmatpush1.msra.mxu0 0.0
        %679 = vmatprep.subr.mxu0 0.0
        %680 = vmatpush1.msra.mxu0 0.0
        %681 = vmatprep.subr.mxu0 0.0
        %682 = vmatpush1.msra.mxu0 0.0
        %683 = vmatprep.subr.mxu0 0.0
        %684 = vmatpush1.msra.mxu0 0.0
        %685 = vmatprep.subr.mxu0 0.0
        %686 = vmatpush1.msra.mxu0 0.0
        %687 = vmatprep.subr.mxu0 0.0
        %688 = vmatpush1.msra.mxu0 0.0
        %689 = vmatprep.subr.mxu0 0.0
        %690 = vmatpush1.msra.mxu0 0.0
        %691 = vmatprep.subr.mxu0 0.0
        %692 = vmatpush1.msra.mxu0 0.0
        %693 = vmatprep.subr.mxu0 0.0
        %694 = vmatpush1.msra.mxu0 0.0
        %695 = vmatprep.subr.mxu0 0.0
        %696 = vmatpush1.msra.mxu0 0.0
        %697 = vmatprep.subr.mxu0 0.0
        %698 = vmatpush1.msra.mxu0 0.0
        %699 = vmatprep.subr.mxu0 0.0
        %700 = vmatpush1.msra.mxu0 0.0
        %701 = vmatprep.subr.mxu0 0.0
        %702 = vmatpush1.msra.mxu0 0.0
        %703 = vmatprep.subr.mxu0 0.0
        %704 = vmatpush1.msra.mxu0 0.0
        %705 = vmatprep.subr.mxu0 0.0
        %706 = vmatpush1.msra.mxu0 0.0
        %707 = vmatprep.subr.mxu0 0.0
        %708 = vmatpush1.msra.mxu0 0.0
        %709 = vmatprep.subr.mxu0 0.0
        %710 = vmatpush1.msra.mxu0 0.0
        %711 = vmatprep.mubr.f32.mxu0 0.0
        %712 = vmatmul.mubr.f32.gmra.mrb[0].mxu0 %v641
        %v713 = vpop.f32.mrb[0].mxu0
        %v714 = vadd.f32 0.0, %v713
        %v715 = vpop.f32.mrb[0].mxu0
        %v716 = vadd.f32 0.0, %v715
        %717 = vdwg.mxu0
        %v718 = vadd.f32 %v613, %v714
        %v719 = vadd.f32 %v614, %v716
        %v720 = vld [vmem:[#allocation2 + $0x4] sm:$0xff]
        %s721 = scalar_lea.vmem %s252, 32
        %v722 = vld [vmem:[%s721] sm:$0xff]
        %v724 = vcombine.high %v720, %v720
        %v726 = vsel %vm337, %v722, 0
        %v728 = vsel %vm341, %v720, 0
        %v730 = vsel %vm341, %v724, 0
        %732 = vmatprep.subr.mxu0 %v730
        %733 = vmatpush1.msra.mxu0 %v728
        %734 = vmatprep.subr.mxu0 0.0
        %735 = vmatpush1.msra.mxu0 0.0
        %736 = vmatprep.subr.mxu0 0.0
        %737 = vmatpush1.msra.mxu0 0.0
        %738 = vmatprep.subr.mxu0 0.0
        %739 = vmatpush1.msra.mxu0 0.0
        %740 = vmatprep.subr.mxu0 0.0
        %741 = vmatpush1.msra.mxu0 0.0
        %742 = vmatprep.subr.mxu0 0.0
        %743 = vmatpush1.msra.mxu0 0.0
        %744 = vmatprep.subr.mxu0 0.0
        %745 = vmatpush1.msra.mxu0 0.0
        %746 = vmatprep.subr.mxu0 0.0
        %747 = vmatpush1.msra.mxu0 0.0
        %748 = vmatprep.subr.mxu0 0.0
        %749 = vmatpush1.msra.mxu0 0.0
        %750 = vmatprep.subr.mxu0 0.0
        %751 = vmatpush1.msra.mxu0 0.0
        %752 = vmatprep.subr.mxu0 0.0
        %753 = vmatpush1.msra.mxu0 0.0
        %754 = vmatprep.subr.mxu0 0.0
        %755 = vmatpush1.msra.mxu0 0.0
        %756 = vmatprep.subr.mxu0 0.0
        %757 = vmatpush1.msra.mxu0 0.0
        %758 = vmatprep.subr.mxu0 0.0
        %759 = vmatpush1.msra.mxu0 0.0
        %760 = vmatprep.subr.mxu0 0.0
        %761 = vmatpush1.msra.mxu0 0.0
        %762 = vmatprep.subr.mxu0 0.0
        %763 = vmatpush1.msra.mxu0 0.0
        %764 = vmatprep.subr.mxu0 0.0
        %765 = vmatpush1.msra.mxu0 0.0
        %766 = vmatprep.subr.mxu0 0.0
        %767 = vmatpush1.msra.mxu0 0.0
        %768 = vmatprep.subr.mxu0 0.0
        %769 = vmatpush1.msra.mxu0 0.0
        %770 = vmatprep.subr.mxu0 0.0
        %771 = vmatpush1.msra.mxu0 0.0
        %772 = vmatprep.subr.mxu0 0.0
        %773 = vmatpush1.msra.mxu0 0.0
        %774 = vmatprep.subr.mxu0 0.0
        %775 = vmatpush1.msra.mxu0 0.0
        %776 = vmatprep.subr.mxu0 0.0
        %777 = vmatpush1.msra.mxu0 0.0
        %778 = vmatprep.subr.mxu0 0.0
        %779 = vmatpush1.msra.mxu0 0.0
        %780 = vmatprep.subr.mxu0 0.0
        %781 = vmatpush1.msra.mxu0 0.0
        %782 = vmatprep.subr.mxu0 0.0
        %783 = vmatpush1.msra.mxu0 0.0
        %784 = vmatprep.subr.mxu0 0.0
        %785 = vmatpush1.msra.mxu0 0.0
        %786 = vmatprep.subr.mxu0 0.0
        %787 = vmatpush1.msra.mxu0 0.0
        %788 = vmatprep.subr.mxu0 0.0
        %789 = vmatpush1.msra.mxu0 0.0
        %790 = vmatprep.subr.mxu0 0.0
        %791 = vmatpush1.msra.mxu0 0.0
        %792 = vmatprep.subr.mxu0 0.0
        %793 = vmatpush1.msra.mxu0 0.0
        %794 = vmatprep.subr.mxu0 0.0
        %795 = vmatpush1.msra.mxu0 0.0
        %796 = vmatprep.mubr.f32.mxu0 0.0
        %797 = vmatmul.mubr.f32.gmra.mrb[0].mxu0 %v726
        %v798 = vpop.f32.mrb[0].mxu0
        %v799 = vadd.f32 0.0, %v798
        %v800 = vpop.f32.mrb[0].mxu0
        %v801 = vadd.f32 0.0, %v800
        %802 = vdwg.mxu0
        %v803 = vadd.f32 %v718, %v799
        %v804 = vadd.f32 %v719, %v801
        %v805 = vld [vmem:[#allocation2 + $0x4] sm:$0xff]
        %v806 = vld [vmem:[#allocation2 + $0xc] sm:$0xf]
        %807 = vrot.lane.b32.xlu0 %v511, 1
        %v808 = vpop.permute.xlu0 %807
        %v809 = vrot.slane %v808, 4
        %v810 = vsel %vm637, %v809, %v808
        %v813 = vmul.f32 %v805, %v810
        %v814 = vmul.f32 %v806, %v809
        %s815 = scalar_lea.vmem %s252, 40
        %v816 = vld [vmem:[%s815] sm:$0xff]
        %v819 = vcombine.high %v813, %v813
        %820 = vrot.lane.b32.xlu0 %v813, 127
        %v821 = vpop.permute.xlu0 %820
        %822 = vrot.lane.b32.xlu0 %v819, 127
        %v823 = vpop.permute.xlu0 %822
        %824 = vrot.lane.b32.xlu0 %v814, 127
        %v825 = vpop.permute.xlu0 %824
        %v826 = vsel %vm620, %v821, %v823
        %v827 = vsel %vm620, %v823, %v825
        %v829 = vsel %vm337, %v816, 0
        %v831 = vsel %vm341, %v826, 0
        %v833 = vsel %vm341, %v827, 0
        %835 = vmatprep.subr.mxu0 %v833
        %836 = vmatpush1.msra.mxu0 %v831
        %837 = vmatprep.subr.mxu0 0.0
        %838 = vmatpush1.msra.mxu0 0.0
        %839 = vmatprep.subr.mxu0 0.0
        %840 = vmatpush1.msra.mxu0 0.0
        %841 = vmatprep.subr.mxu0 0.0
        %842 = vmatpush1.msra.mxu0 0.0
        %843 = vmatprep.subr.mxu0 0.0
        %844 = vmatpush1.msra.mxu0 0.0
        %845 = vmatprep.subr.mxu0 0.0
        %846 = vmatpush1.msra.mxu0 0.0
        %847 = vmatprep.subr.mxu0 0.0
        %848 = vmatpush1.msra.mxu0 0.0
        %849 = vmatprep.subr.mxu0 0.0
        %850 = vmatpush1.msra.mxu0 0.0
        %851 = vmatprep.subr.mxu0 0.0
        %852 = vmatpush1.msra.mxu0 0.0
        %853 = vmatprep.subr.mxu0 0.0
        %854 = vmatpush1.msra.mxu0 0.0
        %855 = vmatprep.subr.mxu0 0.0
        %856 = vmatpush1.msra.mxu0 0.0
        %857 = vmatprep.subr.mxu0 0.0
        %858 = vmatpush1.msra.mxu0 0.0
        %859 = vmatprep.subr.mxu0 0.0
        %860 = vmatpush1.msra.mxu0 0.0
        %861 = vmatprep.subr.mxu0 0.0
        %862 = vmatpush1.msra.mxu0 0.0
        %863 = vmatprep.subr.mxu0 0.0
        %864 = vmatpush1.msra.mxu0 0.0
        %865 = vmatprep.subr.mxu0 0.0
        %866 = vmatpush1.msra.mxu0 0.0
        %867 = vmatprep.subr.mxu0 0.0
        %868 = vmatpush1.msra.mxu0 0.0
        %869 = vmatprep.subr.mxu0 0.0
        %870 = vmatpush1.msra.mxu0 0.0
        %871 = vmatprep.subr.mxu0 0.0
        %872 = vmatpush1.msra.mxu0 0.0
        %873 = vmatprep.subr.mxu0 0.0
        %874 = vmatpush1.msra.mxu0 0.0
        %875 = vmatprep.subr.mxu0 0.0
        %876 = vmatpush1.msra.mxu0 0.0
        %877 = vmatprep.subr.mxu0 0.0
        %878 = vmatpush1.msra.mxu0 0.0
        %879 = vmatprep.subr.mxu0 0.0
        %880 = vmatpush1.msra.mxu0 0.0
        %881 = vmatprep.subr.mxu0 0.0
        %882 = vmatpush1.msra.mxu0 0.0
        %883 = vmatprep.subr.mxu0 0.0
        %884 = vmatpush1.msra.mxu0 0.0
        %885 = vmatprep.subr.mxu0 0.0
        %886 = vmatpush1.msra.mxu0 0.0
        %887 = vmatprep.subr.mxu0 0.0
        %888 = vmatpush1.msra.mxu0 0.0
        %889 = vmatprep.subr.mxu0 0.0
        %890 = vmatpush1.msra.mxu0 0.0
        %891 = vmatprep.subr.mxu0 0.0
        %892 = vmatpush1.msra.mxu0 0.0
        %893 = vmatprep.subr.mxu0 0.0
        %894 = vmatpush1.msra.mxu0 0.0
        %895 = vmatprep.subr.mxu0 0.0
        %896 = vmatpush1.msra.mxu0 0.0
        %897 = vmatprep.subr.mxu0 0.0
        %898 = vmatpush1.msra.mxu0 0.0
        %899 = vmatprep.mubr.f32.mxu0 0.0
        %900 = vmatmul.mubr.f32.gmra.mrb[0].mxu0 %v829
        %v901 = vpop.f32.mrb[0].mxu0
        %v902 = vadd.f32 0.0, %v901
        %v903 = vpop.f32.mrb[0].mxu0
        %v904 = vadd.f32 0.0, %v903
        %905 = vdwg.mxu0
        %v906 = vadd.f32 %v803, %v902
        %v907 = vadd.f32 %v804, %v904
        %v908 = vld [vmem:[#allocation2 + $0x4] sm:$0xff]
        %v909 = vld [vmem:[#allocation2 + $0xc] sm:$0xf]
        %910 = vrot.lane.b32.xlu0 %v312, 15
        %v911 = vpop.permute.xlu0 %910
        %v912 = vrot.slane %v911, 4
        %v913 = vsel %vm532, %v912, %v911
        %v916 = vmul.f32 %v908, %v913
        %v917 = vmul.f32 %v909, %v912
        %s918 = scalar_lea.vmem %s252, 48
        %v919 = vld [vmem:[%s918] sm:$0xff]
        %v922 = vcombine.high %v916, %v916
        %923 = vrot.lane.b32.xlu0 %v916, 113
        %v924 = vpop.permute.xlu0 %923
        %925 = vrot.lane.b32.xlu0 %v922, 113
        %v926 = vpop.permute.xlu0 %925
        %927 = vrot.lane.b32.xlu0 %v917, 113
        %v928 = vpop.permute.xlu0 %927
        %v929 = vsel %vm515, %v924, %v926
        %v930 = vsel %vm515, %v926, %v928
        %v932 = vsel %vm337, %v919, 0
        %v934 = vsel %vm341, %v929, 0
        %v936 = vsel %vm341, %v930, 0
        %938 = vmatprep.subr.mxu0 %v936
        %939 = vmatpush1.msra.mxu0 %v934
        %940 = vmatprep.subr.mxu0 0.0
        %941 = vmatpush1.msra.mxu0 0.0
        %942 = vmatprep.subr.mxu0 0.0
        %943 = vmatpush1.msra.mxu0 0.0
        %944 = vmatprep.subr.mxu0 0.0
        %945 = vmatpush1.msra.mxu0 0.0
        %946 = vmatprep.subr.mxu0 0.0
        %947 = vmatpush1.msra.mxu0 0.0
        %948 = vmatprep.subr.mxu0 0.0
        %949 = vmatpush1.msra.mxu0 0.0
        %950 = vmatprep.subr.mxu0 0.0
        %951 = vmatpush1.msra.mxu0 0.0
        %952 = vmatprep.subr.mxu0 0.0
        %953 = vmatpush1.msra.mxu0 0.0
        %954 = vmatprep.subr.mxu0 0.0
        %955 = vmatpush1.msra.mxu0 0.0
        %956 = vmatprep.subr.mxu0 0.0
        %957 = vmatpush1.msra.mxu0 0.0
        %958 = vmatprep.subr.mxu0 0.0
        %959 = vmatpush1.msra.mxu0 0.0
        %960 = vmatprep.subr.mxu0 0.0
        %961 = vmatpush1.msra.mxu0 0.0
        %962 = vmatprep.subr.mxu0 0.0
        %963 = vmatpush1.msra.mxu0 0.0
        %964 = vmatprep.subr.mxu0 0.0
        %965 = vmatpush1.msra.mxu0 0.0
        %966 = vmatprep.subr.mxu0 0.0
        %967 = vmatpush1.msra.mxu0 0.0
        %968 = vmatprep.subr.mxu0 0.0
        %969 = vmatpush1.msra.mxu0 0.0
        %970 = vmatprep.subr.mxu0 0.0
        %971 = vmatpush1.msra.mxu0 0.0
        %972 = vmatprep.subr.mxu0 0.0
        %973 = vmatpush1.msra.mxu0 0.0
        %974 = vmatprep.subr.mxu0 0.0
        %975 = vmatpush1.msra.mxu0 0.0
        %976 = vmatprep.subr.mxu0 0.0
        %977 = vmatpush1.msra.mxu0 0.0
        %978 = vmatprep.subr.mxu0 0.0
        %979 = vmatpush1.msra.mxu0 0.0
        %980 = vmatprep.subr.mxu0 0.0
        %981 = vmatpush1.msra.mxu0 0.0
        %982 = vmatprep.subr.mxu0 0.0
        %983 = vmatpush1.msra.mxu0 0.0
        %984 = vmatprep.subr.mxu0 0.0
        %985 = vmatpush1.msra.mxu0 0.0
        %986 = vmatprep.subr.mxu0 0.0
        %987 = vmatpush1.msra.mxu0 0.0
        %988 = vmatprep.subr.mxu0 0.0
        %989 = vmatpush1.msra.mxu0 0.0
        %990 = vmatprep.subr.mxu0 0.0
        %991 = vmatpush1.msra.mxu0 0.0
        %992 = vmatprep.subr.mxu0 0.0
        %993 = vmatpush1.msra.mxu0 0.0
        %994 = vmatprep.subr.mxu0 0.0
        %995 = vmatpush1.msra.mxu0 0.0
        %996 = vmatprep.subr.mxu0 0.0
        %997 = vmatpush1.msra.mxu0 0.0
        %998 = vmatprep.subr.mxu0 0.0
        %999 = vmatpush1.msra.mxu0 0.0
        %1000 = vmatprep.subr.mxu0 0.0
        %1001 = vmatpush1.msra.mxu0 0.0
        %1002 = vmatprep.mubr.f32.mxu0 0.0
        %1003 = vmatmul.mubr.f32.gmra.mrb[0].mxu0 %v932
        %v1004 = vpop.f32.mrb[0].mxu0
        %v1005 = vadd.f32 0.0, %v1004
        %v1006 = vpop.f32.mrb[0].mxu0
        %v1007 = vadd.f32 0.0, %v1006
        %1008 = vdwg.mxu0
        %v1009 = vadd.f32 %v906, %v1005
        %v1010 = vadd.f32 %v907, %v1007
        %v1011 = vld [vmem:[#allocation2 + $0x4] sm:$0xff]
        %v1012 = vld [vmem:[#allocation2 + $0xc] sm:$0xf]
        %s1013 = scalar_lea.vmem %s252, 56
        %v1014 = vld [vmem:[%s1013] sm:$0xff]
        %v1017 = vcombine.high %v1011, %v1011
        %1018 = vrot.lane.b32.xlu0 %v1011, 112
        %v1019 = vpop.permute.xlu0 %1018
        %1020 = vrot.lane.b32.xlu0 %v1017, 112
        %v1021 = vpop.permute.xlu0 %1020
        %1022 = vrot.lane.b32.xlu0 %v1012, 112
        %v1023 = vpop.permute.xlu0 %1022
        %vm1024 = vcmask 916480
        %v1025 = vsel %vm1024, %v1019, %v1021
        %v1026 = vsel %vm1024, %v1021, %v1023
        %v1028 = vsel %vm337, %v1014, 0
        %v1030 = vsel %vm341, %v1025, 0
        %v1032 = vsel %vm341, %v1026, 0
        %1034 = vmatprep.subr.mxu0 %v1032
        %1035 = vmatpush1.msra.mxu0 %v1030
        %1036 = vmatprep.subr.mxu0 0.0
        %1037 = vmatpush1.msra.mxu0 0.0
        %1038 = vmatprep.subr.mxu0 0.0
        %1039 = vmatpush1.msra.mxu0 0.0
        %1040 = vmatprep.subr.mxu0 0.0
        %1041 = vmatpush1.msra.mxu0 0.0
        %1042 = vmatprep.subr.mxu0 0.0
        %1043 = vmatpush1.msra.mxu0 0.0
        %1044 = vmatprep.subr.mxu0 0.0
        %1045 = vmatpush1.msra.mxu0 0.0
        %1046 = vmatprep.subr.mxu0 0.0
        %1047 = vmatpush1.msra.mxu0 0.0
        %1048 = vmatprep.subr.mxu0 0.0
        %1049 = vmatpush1.msra.mxu0 0.0
        %1050 = vmatprep.subr.mxu0 0.0
        %1051 = vmatpush1.msra.mxu0 0.0
        %1052 = vmatprep.subr.mxu0 0.0
        %1053 = vmatpush1.msra.mxu0 0.0
        %1054 = vmatprep.subr.mxu0 0.0
        %1055 = vmatpush1.msra.mxu0 0.0
        %1056 = vmatprep.subr.mxu0 0.0
        %1057 = vmatpush1.msra.mxu0 0.0
        %1058 = vmatprep.subr.mxu0 0.0
        %1059 = vmatpush1.msra.mxu0 0.0
        %1060 = vmatprep.subr.mxu0 0.0
        %1061 = vmatpush1.msra.mxu0 0.0
        %1062 = vmatprep.subr.mxu0 0.0
        %1063 = vmatpush1.msra.mxu0 0.0
        %1064 = vmatprep.subr.mxu0 0.0
        %1065 = vmatpush1.msra.mxu0 0.0
        %1066 = vmatprep.subr.mxu0 0.0
        %1067 = vmatpush1.msra.mxu0 0.0
        %1068 = vmatprep.subr.mxu0 0.0
        %1069 = vmatpush1.msra.mxu0 0.0
        %1070 = vmatprep.subr.mxu0 0.0
        %1071 = vmatpush1.msra.mxu0 0.0
        %1072 = vmatprep.subr.mxu0 0.0
        %1073 = vmatpush1.msra.mxu0 0.0
        %1074 = vmatprep.subr.mxu0 0.0
        %1075 = vmatpush1.msra.mxu0 0.0
        %1076 = vmatprep.subr.mxu0 0.0
        %1077 = vmatpush1.msra.mxu0 0.0
        %1078 = vmatprep.subr.mxu0 0.0
        %1079 = vmatpush1.msra.mxu0 0.0
        %1080 = vmatprep.subr.mxu0 0.0
        %1081 = vmatpush1.msra.mxu0 0.0
        %1082 = vmatprep.subr.mxu0 0.0
        %1083 = vmatpush1.msra.mxu0 0.0
        %1084 = vmatprep.subr.mxu0 0.0
        %1085 = vmatpush1.msra.mxu0 0.0
        %1086 = vmatprep.subr.mxu0 0.0
        %1087 = vmatpush1.msra.mxu0 0.0
        %1088 = vmatprep.subr.mxu0 0.0
        %1089 = vmatpush1.msra.mxu0 0.0
        %1090 = vmatprep.subr.mxu0 0.0
        %1091 = vmatpush1.msra.mxu0 0.0
        %1092 = vmatprep.subr.mxu0 0.0
        %1093 = vmatpush1.msra.mxu0 0.0
        %1094 = vmatprep.subr.mxu0 0.0
        %1095 = vmatpush1.msra.mxu0 0.0
        %1096 = vmatprep.subr.mxu0 0.0
        %1097 = vmatpush1.msra.mxu0 0.0
        %1098 = vmatprep.mubr.f32.mxu0 0.0
        %1099 = vmatmul.mubr.f32.gmra.mrb[0].mxu0 %v1028
        %v1100 = vpop.f32.mrb[0].mxu0
        %v1101 = vadd.f32 0.0, %v1100
        %v1102 = vpop.f32.mrb[0].mxu0
        %v1103 = vadd.f32 0.0, %v1102
        %1104 = vdwg.mxu0
        %v1105 = vadd.f32 %v1009, %v1101
        %v1106 = vadd.f32 %v1010, %v1103
        %v1107 = vld [vmem:[#allocation2 + $0x4] sm:$0xff]
        %v1108 = vld [vmem:[#allocation2 + $0xc] sm:$0xf]
        %1109 = vrot.lane.b32.xlu0 %v511, 17
        %v1110 = vpop.permute.xlu0 %1109
        %v1111 = vrot.slane %v1110, 4
        %v1112 = vsel %vm426, %v1111, %v1110
        %v1115 = vmul.f32 %v1107, %v1112
        %v1116 = vmul.f32 %v1108, %v1111
        %s1117 = scalar_lea.vmem %s252, 64
        %v1118 = vld [vmem:[%s1117] sm:$0xff]
        %v1121 = vcombine.high %v1115, %v1115
        %1122 = vrot.lane.b32.xlu0 %v1115, 111
        %v1123 = vpop.permute.xlu0 %1122
        %1124 = vrot.lane.b32.xlu0 %v1121, 111
        %v1125 = vpop.permute.xlu0 %1124
        %1126 = vrot.lane.b32.xlu0 %v1116, 111
        %v1127 = vpop.permute.xlu0 %1126
        %v1128 = vsel %vm316, %v1123, %v1125
        %v1129 = vsel %vm316, %v1125, %v1127
        %v1131 = vsel %vm337, %v1118, 0
        %v1133 = vsel %vm341, %v1128, 0
        %v1135 = vsel %vm341, %v1129, 0
        %1137 = vmatprep.subr.mxu0 %v1135
        %1138 = vmatpush1.msra.mxu0 %v1133
        %1139 = vmatprep.subr.mxu0 0.0
        %1140 = vmatpush1.msra.mxu0 0.0
        %1141 = vmatprep.subr.mxu0 0.0
        %1142 = vmatpush1.msra.mxu0 0.0
        %1143 = vmatprep.subr.mxu0 0.0
        %1144 = vmatpush1.msra.mxu0 0.0
        %1145 = vmatprep.subr.mxu0 0.0
        %1146 = vmatpush1.msra.mxu0 0.0
        %1147 = vmatprep.subr.mxu0 0.0
        %1148 = vmatpush1.msra.mxu0 0.0
        %1149 = vmatprep.subr.mxu0 0.0
        %1150 = vmatpush1.msra.mxu0 0.0
        %1151 = vmatprep.subr.mxu0 0.0
        %1152 = vmatpush1.msra.mxu0 0.0
        %1153 = vmatprep.subr.mxu0 0.0
        %1154 = vmatpush1.msra.mxu0 0.0
        %1155 = vmatprep.subr.mxu0 0.0
        %1156 = vmatpush1.msra.mxu0 0.0
        %1157 = vmatprep.subr.mxu0 0.0
        %1158 = vmatpush1.msra.mxu0 0.0
        %1159 = vmatprep.subr.mxu0 0.0
        %1160 = vmatpush1.msra.mxu0 0.0
        %1161 = vmatprep.subr.mxu0 0.0
        %1162 = vmatpush1.msra.mxu0 0.0
        %1163 = vmatprep.subr.mxu0 0.0
        %1164 = vmatpush1.msra.mxu0 0.0
        %1165 = vmatprep.subr.mxu0 0.0
        %1166 = vmatpush1.msra.mxu0 0.0
        %1167 = vmatprep.subr.mxu0 0.0
        %1168 = vmatpush1.msra.mxu0 0.0
        %1169 = vmatprep.subr.mxu0 0.0
        %1170 = vmatpush1.msra.mxu0 0.0
        %1171 = vmatprep.subr.mxu0 0.0
        %1172 = vmatpush1.msra.mxu0 0.0
        %1173 = vmatprep.subr.mxu0 0.0
        %1174 = vmatpush1.msra.mxu0 0.0
        %1175 = vmatprep.subr.mxu0 0.0
        %1176 = vmatpush1.msra.mxu0 0.0
        %1177 = vmatprep.subr.mxu0 0.0
        %1178 = vmatpush1.msra.mxu0 0.0
        %1179 = vmatprep.subr.mxu0 0.0
        %1180 = vmatpush1.msra.mxu0 0.0
        %1181 = vmatprep.subr.mxu0 0.0
        %1182 = vmatpush1.msra.mxu0 0.0
        %1183 = vmatprep.subr.mxu0 0.0
        %1184 = vmatpush1.msra.mxu0 0.0
        %1185 = vmatprep.subr.mxu0 0.0
        %1186 = vmatpush1.msra.mxu0 0.0
        %1187 = vmatprep.subr.mxu0 0.0
        %1188 = vmatpush1.msra.mxu0 0.0
        %1189 = vmatprep.subr.mxu0 0.0
        %1190 = vmatpush1.msra.mxu0 0.0
        %1191 = vmatprep.subr.mxu0 0.0
        %1192 = vmatpush1.msra.mxu0 0.0
        %1193 = vmatprep.subr.mxu0 0.0
        %1194 = vmatpush1.msra.mxu0 0.0
        %1195 = vmatprep.subr.mxu0 0.0
        %1196 = vmatpush1.msra.mxu0 0.0
        %1197 = vmatprep.subr.mxu0 0.0
        %1198 = vmatpush1.msra.mxu0 0.0
        %1199 = vmatprep.subr.mxu0 0.0
        %1200 = vmatpush1.msra.mxu0 0.0
        %1201 = vmatprep.mubr.f32.mxu0 0.0
        %1202 = vmatmul.mubr.f32.gmra.mrb[0].mxu0 %v1131
        %v1203 = vpop.f32.mrb[0].mxu0
        %v1204 = vadd.f32 0.0, %v1203
        %v1205 = vpop.f32.mrb[0].mxu0
        %v1206 = vadd.f32 0.0, %v1205
        %1207 = vdwg.mxu0
        %v1208 = vadd.f32 %v1105, %v1204
        %v1209 = vadd.f32 %v1106, %v1206
        %v1210 = vld [vmem:[%s256] sm:$0xff]
        %1212 = vset.pattern.permute.xlu0 0
        %1213 = vperm.xlu0 %1212, %v1210
        %v1214 = vpop.permute.xlu0 %1213
        %v1216 = vmul.f32 %v1208, %v1214
        %v1217 = vmul.f32 %v1209, %v1214
        %v1218 = vld [vmem:[%s260] sm:$0xff]
        %1220 = vset.pattern.permute.xlu0 0
        %1221 = vperm.xlu0 %1220, %v1218
        %v1222 = vpop.permute.xlu0 %1221
        %v1224 = vadd.f32 %v1216, %v1222
        %v1225 = vadd.f32 %v1217, %v1222
        %v1226 = vmax.f32 %v1224, 0.0
        %v1227 = vmax.f32 %v1225, 0.0
        %1228 = vst [vmem:[%s243] sm:$0xff] %v1226
        %1229 = vst [vmem:[%s243 + $0x8] sm:$0xff] %v1227
        %s1230 = sand.u32 %s144, 1
        %s1231 = scalar_lea.sflag [#allocation4], %s1230
        %s1232 = sand.u32 %s144, 1
        %s1233 = smul.addr %s1232, 16
        %s1234 = scalar_lea.vmem [#allocation3], %s1233
        // Predicated region
        $region41: #{tpu_custom_call.1} parent=35 // pred_check
          %p1235 = pneg %p154
        $region42: #{tpu_custom_call.1} parent=35 // pred_check_branch
          %1237 = sbr.rel (%p1235) target = $region44
        $region43: #{tpu_custom_call.1} parent=35 // pred_region
          %s1239 = ssub.s32 256, 256
          %1240 = vsyncadd %s1231, %s1239
          %s1241 = smul.addr %s23, 2
          %s1242 = smul.addr %s22, 2
          %s1243 = sadd.s32 %s1241, %s1242
          %s1244 = smul.addr %s1243, 128
          %s1245 = scalar_lea.hbm %s4, %s1244
          %s1247 = sshll.u32 %s1234, 4
          %s1248 = int_to_ptr.vmem [resolvable:$true] %s1247
          %1250 = dma.vmem_to_hbm [thread:$0]  %s1248, 256, %s1245, %s1231
        $region44: #{tpu_custom_call.1} parent=35 // pred_fallthru
          _
      $region36: #{tpu_custom_call.1} parent=5 // pred_fallthru
        _
      %p1251 = scmp.le.s32.totalorder 2, %s13
      // Predicated region
      $region45: #{tpu_custom_call.1} parent=5 // pred_check
        %p1252 = pneg %p1251
      $region46: #{tpu_custom_call.1} parent=5 // pred_check_branch
        %1254 = sbr.rel (%p1252) target = $region48
      $region47: #{tpu_custom_call.1} parent=5 // pred_region
        %s1255 = ssub.s32 %s13, 2
        // Predicated region
        $region49: #{tpu_custom_call.1} parent=47 // pred_check
          %p1256 = pneg %p160
        $region50: #{tpu_custom_call.1} parent=47 // pred_check_branch
          %1258 = sbr.rel (%p1256) target = $region52
        $region51: #{tpu_custom_call.1} parent=47 // pred_region
          %s1259 = sand.u32 %s145, 1
          %s1260 = scalar_lea.sflag [#allocation4], %s1259
          %s1261 = sand.u32 %s145, 1
          %s1262 = smul.addr %s1261, 16
          %s1263 = scalar_lea.vmem [#allocation3], %s1262
          %1264 = dma.done %s1260, 256
        $region52: #{tpu_custom_call.1} parent=47 // pred_fallthru
          _
      $region48: #{tpu_custom_call.1} parent=5 // pred_fallthru
        _
    $region6: #{tpu_custom_call.1} parent=1 // loop_footer
      %s17 = sadd.s32 1, %s13
    $region7: #{tpu_custom_call.1} parent=1 // loop_footer_branch
      %12 = sbr.rel target = $region3
    $region8: #{tpu_custom_call.1} parent=1 // loop_exit
      _
    %1265 = vsyncpa [#allocation4], 1
    %s1266 = scalar_lea.sflag [#allocation4], 1
    %1267 = vsyncpa %s1266, 1

</llo_original>
